<compile_context>
chip_gen: v5e
topology: v5e:2x2
jax: 0.10.0
libtpu: 0.0.40
codegen_flags: <defaults>
</compile_context>

<pallas_src>
import jax
import jax.numpy as jnp
import numpy as np
from jax.experimental import pallas as pl
from jax.experimental.pallas import tpu as pltpu


IN_FEATURES = 32 * 32   # 1024
OUT_FEATURES = 10


def _tpu_generation_config():
    """Per-generation tiling knobs, keyed off device_kind (robust fallback)."""
    kind = ""
    try:
        kind = jax.devices()[0].device_kind.lower()
    except Exception:
        pass
    if "v7" in kind:
        # 2 TensorCores / chip, 64 MiB physical VMEM per TC.
        return dict(num_tc=2, bm_max=2048, tile_floor=256,
                    vmem_limit_cap=48 * 1024 * 1024)
    if "v6" in kind:
        # 1 TC, 128 MiB VMEM -> big tiles are free.
        return dict(num_tc=1, bm_max=2048, tile_floor=2048,
                    vmem_limit_cap=100 * 1024 * 1024)
    # v5e / unknown: conservative default (also 1 TC).
    return dict(num_tc=1, bm_max=1024, tile_floor=1024,
                vmem_limit_cap=100 * 1024 * 1024)


def linear_kernel(x_ref, w_ref, b_ref, o_ref):
    # x_ref: (bm, K)  w_ref: (K, N)  b_ref: (1, N)  o_ref: (bm, N)
    acc = jnp.dot(x_ref[...], w_ref[...], preferred_element_type=jnp.float32)
    o_ref[...] = (acc + b_ref[...]).astype(o_ref.dtype)


def simple_linear_net_forward(x, w, b, *, bm=None):
    """x: (B, 1024), w: (1024, 10), b: (10,)  ->  (B, 10) in x.dtype."""
    B, K = x.shape
    Kw, N = w.shape
    assert K == Kw, "weight inner dim must match x features"

    cfg = _tpu_generation_config()
    x_itemsize = jnp.dtype(x.dtype).itemsize
    # Sublane alignment of the batch tile: 8 rows for f32, 16 for bf16,
    # 32 for int8/fp8 (packed-sublane minimum tiles).
    align = max(8, 32 // x_itemsize)

    bm_req = cfg["bm_max"] if bm is None else bm

    # ---- choose the batch tile (never larger than the array itself) --------
    if B < align:
        bm_eff = B  # full-dim block is always legal
    else:
        bm_eff = max(align, min(bm_req, (B // align) * align))
        if cfg["num_tc"] >= 2 and B >= 4 * cfg["tile_floor"]:
            # v7x: make sure each of the 2 TensorCores gets >= 2 grid steps
            # (target ~8 steps total) so per-core DMA double-buffering overlaps.
            target = (pl.cdiv(B, 8) // align) * align
            bm_eff = min(bm_eff, max(cfg["tile_floor"], target))

    grid = (pl.cdiv(B, bm_eff),)   # ragged last block: OOB output rows masked

    # Match weight dtype to x only if x is narrower (cheap: 40 KiB); the
    # accumulate stays f32 in the kernel either way.  x itself is never cast.
    if x_itemsize < jnp.dtype(w.dtype).itemsize:
        w = w.astype(x.dtype)
    b2d = b.reshape(1, N).astype(jnp.float32)  # keep bias 2-D / TPU friendly

    # ---- explicit VMEM budget ----------------------------------------------
    working = (2 * bm_eff * K * x_itemsize                 # double-buffered x
               + K * N * jnp.dtype(w.dtype).itemsize       # resident weights
               + 2 * bm_eff * N * 4                        # double-buffered out
               + N * 4)                                    # bias
    vmem_limit = int(min(max(2 * working, 16 * 1024 * 1024),
                         cfg["vmem_limit_cap"]))

    cost = pl.CostEstimate(
        flops=2 * B * K * N,
        bytes_accessed=(B * K * x_itemsize
                        + K * N * jnp.dtype(w.dtype).itemsize
                        + B * N * x_itemsize),
        transcendentals=0,
    )

    return pl.pallas_call(
        linear_kernel,
        out_shape=jax.ShapeDtypeStruct((B, N), x.dtype),
        grid_spec=pltpu.PrefetchScalarGridSpec(
            num_scalar_prefetch=0,
            grid=grid,
            in_specs=[
                pl.BlockSpec((bm_eff, K), lambda i: (i, 0)),  # streamed x tile
                pl.BlockSpec((K, N), lambda i: (0, 0)),       # resident weights
                pl.BlockSpec((1, N), lambda i: (0, 0)),       # resident bias
            ],
            out_specs=pl.BlockSpec((bm_eff, N), lambda i: (i, 0)),
        ),
        compiler_params=pltpu.CompilerParams(
            dimension_semantics=("parallel",),
            vmem_limit_bytes=vmem_limit,
        ),
        cost_estimate=cost,
    )(x, w, b2d)


if __name__ == "__main__":
    key = jax.random.PRNGKey(0)
    kx1, kx2, kw = jax.random.split(key, 3)

    # Deterministic parameter init mirroring the module's __init__.
    w = jax.random.normal(kw, (IN_FEATURES, OUT_FEATURES), dtype=jnp.float32) / np.sqrt(32.0)
    bias_full = jnp.zeros((32,), dtype=jnp.float32)   # as declared in __init__
    bias = bias_full[:OUT_FEATURES]                   # see TODO(synk) above

    # Case 1: small batch, exact-fit single block, generation-default tile.
    B1 = 24
    x1 = jax.random.normal(kx1, (B1, IN_FEATURES), dtype=jnp.float32)
    out1 = jax.block_until_ready(simple_linear_net_forward(x1, w, bias))
    ref1 = x1 @ w + bias[None, :]
    np.testing.assert_allclose(np.asarray(out1), np.asarray(ref1),
                               rtol=1e-5, atol=1e-4)

    # Case 2: non-divisible batch with a forced small tile -> exercises the
    # ragged last block path (no jnp.pad, no output slicing).
    B2 = 20
    x2 = jax.random.normal(kx2, (B2, IN_FEATURES), dtype=jnp.float32)
    out2 = jax.block_until_ready(simple_linear_net_forward(x2, w, bias, bm=16))
    ref2 = x2 @ w + bias[None, :]
    np.testing.assert_allclose(np.asarray(out2), np.asarray(ref2),
                               rtol=1e-5, atol=1e-4)

    print("KERNEL_OK")
</pallas_src>

<mosaic_0001>
module attributes {stable_mosaic.version = 11 : i64} {
  func.func @linear_kernel(%arg0: i32, %arg1: memref<24x1024xf32, #tpu.memory_space<vmem>>, %arg2: memref<1024x10xf32, #tpu.memory_space<vmem>>, %arg3: memref<1x10xf32, #tpu.memory_space<vmem>>, %arg4: memref<24x10xf32, #tpu.memory_space<vmem>>) attributes {dimension_semantics = [#tpu.dimension_semantics<parallel>], iteration_bounds = array<i64: 1>, scalar_prefetch = 0 : i64, scratch_operands = 0 : i64, tpu.core_type = #tpu.core_type<tc>, window_params = [{transform_indices = @transform_0, window_bounds = array<i64: 24, 1024>}, {pipeline_mode = #tpu.pipeline_mode<synchronous>, transform_indices = @transform_1, window_bounds = array<i64: 1024, 10>}, {pipeline_mode = #tpu.pipeline_mode<synchronous>, transform_indices = @transform_2, window_bounds = array<i64: 1, 10>}, {transform_indices = @transform_3, window_bounds = array<i64: 24, 10>}]} {
    %c0 = arith.constant 0 : index
    %c0_0 = arith.constant 0 : index
    %0 = vector.load %arg1[%c0, %c0_0] : memref<24x1024xf32, #tpu.memory_space<vmem>>, vector<24x1024xf32>
    %c0_1 = arith.constant 0 : index
    %c0_2 = arith.constant 0 : index
    %1 = vector.load %arg2[%c0_1, %c0_2] : memref<1024x10xf32, #tpu.memory_space<vmem>>, vector<1024x10xf32>
    %cst = arith.constant dense<0.000000e+00> : vector<24x10xf32>
    %2 = tpu.matmul %0, %1, %cst {dimension_numbers = #tpu.dot_dimension_numbers<[1], [0], [0], [1], [0, 0, 1, 1], [], []>} : vector<24x1024xf32>, vector<1024x10xf32>, vector<24x10xf32> -> vector<24x10xf32>
    %c0_3 = arith.constant 0 : index
    %c0_4 = arith.constant 0 : index
    %3 = vector.load %arg3[%c0_3, %c0_4] : memref<1x10xf32, #tpu.memory_space<vmem>>, vector<1x10xf32>
    %4 = vector.broadcast %3 : vector<1x10xf32> to vector<24x10xf32>
    %5 = arith.addf %2, %4 : vector<24x10xf32>
    %c0_5 = arith.constant 0 : index
    %c0_6 = arith.constant 0 : index
    %6 = vector.load %arg4[%c0_5, %c0_6] : memref<24x10xf32, #tpu.memory_space<vmem>>, vector<24x10xf32>
    tpu.vector_store %arg4[%c0_5, %c0_6], %5 {strides = array<i32>} : memref<24x10xf32, #tpu.memory_space<vmem>>, vector<24x10xf32>,
    return
  }
  func.func @transform_0(%arg0: i32) -> (i32, i32) {
    %c0_i32 = arith.constant 0 : i32
    %c0_i32_0 = arith.constant 0 : i32
    return %arg0, %c0_i32 : i32, i32
  }
  func.func @transform_1(%arg0: i32) -> (i32, i32) {
    %c0_i32 = arith.constant 0 : i32
    %c0_i32_0 = arith.constant 0 : i32
    %c0_i32_1 = arith.constant 0 : i32
    return %c0_i32, %c0_i32_0 : i32, i32
  }
  func.func @transform_2(%arg0: i32) -> (i32, i32) {
    %c0_i32 = arith.constant 0 : i32
    %c0_i32_0 = arith.constant 0 : i32
    %c0_i32_1 = arith.constant 0 : i32
    return %c0_i32, %c0_i32_0 : i32, i32
  }
  func.func @transform_3(%arg0: i32) -> (i32, i32) {
    %c0_i32 = arith.constant 0 : i32
    %c0_i32_0 = arith.constant 0 : i32
    return %arg0, %c0_i32 : i32, i32
  }
}

</mosaic_0001>

<llo_original>
// kernel: tpu_custom_call.1
$region0: #{tpu_custom_call.1}
  #allocation0 [shape = 'u32[]', space=smem, size = 0x4, offset = 0x4, fixed_abs, tag = 'smem constant byte address 0x4 - core index']
  #allocation1 [shape = 'u32[72,128]{1,0:T(1,128)}', space=vmem, size = 0x9000, scoped, tag = 'internal scratch']
  %s0 = inlined_call_operand.vmem [shape: f32[24,1024], index: 0, kind: input, shape index: {}]
  %s1 = inlined_call_operand.vmem [shape: f32[1024,10], index: 1, kind: input, shape index: {}]
  %s2 = inlined_call_operand.vmem [shape: f32[1,10], index: 2, kind: input, shape index: {}]
  %s3 = inlined_call_operand.vmem [shape: f32[24,10], index: 3, kind: output, shape index: {}]
  %s4 = sld [smem:[#allocation0]]
  $region22: #{tpu_custom_call.1} parent=0
    _
  %s6 = ssub.s32 1, %s4
  %s7 = scalar_select 0, %s6, %s4
  // Predicated region
  $region2: #{tpu_custom_call.1} parent=0 // pred_check
    _
  $region3: #{tpu_custom_call.1} parent=0 // pred_check_branch
    %9 = sbr.rel (0) target = $region5
  $region4: #{tpu_custom_call.1} parent=0 // pred_region
    _
  $region5: #{tpu_custom_call.1} parent=0 // pred_fallthru
    _
  // Predicated region
  $region6: #{tpu_custom_call.1} parent=0 // pred_check
    _
  $region7: #{tpu_custom_call.1} parent=0 // pred_check_branch
    %11 = sbr.rel (0) target = $region9
  $region8: #{tpu_custom_call.1} parent=0 // pred_region
    _
  $region9: #{tpu_custom_call.1} parent=0 // pred_fallthru
    _
  // Predicated region
  $region10: #{tpu_custom_call.1} parent=0 // pred_check
    _
  $region11: #{tpu_custom_call.1} parent=0 // pred_check_branch
    %13 = sbr.rel (0) target = $region13
  $region12: #{tpu_custom_call.1} parent=0 // pred_region
    _
  $region13: #{tpu_custom_call.1} parent=0 // pred_fallthru
    _
  %v14 = vld [vmem:[%s0] sm:$0xff]
  %v15 = vld [vmem:[%s0 + $0x8] sm:$0xff]
  %v16 = vld [vmem:[%s0 + $0x10] sm:$0xff]
  %v17 = vld [vmem:[%s0 + $0x18] sm:$0xff]
  %v18 = vld [vmem:[%s0 + $0x20] sm:$0xff]
  %v19 = vld [vmem:[%s0 + $0x28] sm:$0xff]
  %v20 = vld [vmem:[%s0 + $0x30] sm:$0xff]
  %v21 = vld [vmem:[%s0 + $0x38] sm:$0xff]
  %v22 = vld [vmem:[%s0 + $0x40] sm:$0xff]
  %v23 = vld [vmem:[%s0 + $0x48] sm:$0xff]
  %v24 = vld [vmem:[%s0 + $0x50] sm:$0xff]
  %v25 = vld [vmem:[%s0 + $0x58] sm:$0xff]
  %v26 = vld [vmem:[%s0 + $0x60] sm:$0xff]
  %v27 = vld [vmem:[%s0 + $0x68] sm:$0xff]
  %v28 = vld [vmem:[%s0 + $0x70] sm:$0xff]
  %v29 = vld [vmem:[%s0 + $0x78] sm:$0xff]
  %v30 = vld [vmem:[%s0 + $0x80] sm:$0xff]
  %v31 = vld [vmem:[%s0 + $0x88] sm:$0xff]
  %v32 = vld [vmem:[%s0 + $0x90] sm:$0xff]
  %v33 = vld [vmem:[%s0 + $0x98] sm:$0xff]
  %v34 = vld [vmem:[%s0 + $0xa0] sm:$0xff]
  %v35 = vld [vmem:[%s0 + $0xa8] sm:$0xff]
  %v36 = vld [vmem:[%s0 + $0xb0] sm:$0xff]
  %v37 = vld [vmem:[%s0 + $0xb8] sm:$0xff]
  %v38 = vld [vmem:[%s1] sm:$0xff]
  %v39 = vld [vmem:[%s1 + $0x8] sm:$0xff]
  %v40 = vld [vmem:[%s1 + $0x10] sm:$0xff]
  %v41 = vld [vmem:[%s1 + $0x18] sm:$0xff]
  %v42 = vld [vmem:[%s1 + $0x20] sm:$0xff]
  %v43 = vld [vmem:[%s1 + $0x28] sm:$0xff]
  %v44 = vld [vmem:[%s1 + $0x30] sm:$0xff]
  %v45 = vld [vmem:[%s1 + $0x38] sm:$0xff]
  %v46 = vld [vmem:[%s1 + $0x40] sm:$0xff]
  %v47 = vld [vmem:[%s1 + $0x48] sm:$0xff]
  %v48 = vld [vmem:[%s1 + $0x50] sm:$0xff]
  %v49 = vld [vmem:[%s1 + $0x58] sm:$0xff]
  %v50 = vld [vmem:[%s1 + $0x60] sm:$0xff]
  %v51 = vld [vmem:[%s1 + $0x68] sm:$0xff]
  %v52 = vld [vmem:[%s1 + $0x70] sm:$0xff]
  %v53 = vld [vmem:[%s1 + $0x78] sm:$0xff]
  %v54 = vld [vmem:[%s1 + $0x80] sm:$0xff]
  %v55 = vld [vmem:[%s1 + $0x88] sm:$0xff]
  %v56 = vld [vmem:[%s1 + $0x90] sm:$0xff]
  %v57 = vld [vmem:[%s1 + $0x98] sm:$0xff]
  %v58 = vld [vmem:[%s1 + $0xa0] sm:$0xff]
  %v59 = vld [vmem:[%s1 + $0xa8] sm:$0xff]
  %v60 = vld [vmem:[%s1 + $0xb0] sm:$0xff]
  %v61 = vld [vmem:[%s1 + $0xb8] sm:$0xff]
  %v62 = vld [vmem:[%s1 + $0xc0] sm:$0xff]
  %v63 = vld [vmem:[%s1 + $0xc8] sm:$0xff]
  %v64 = vld [vmem:[%s1 + $0xd0] sm:$0xff]
  %v65 = vld [vmem:[%s1 + $0xd8] sm:$0xff]
  %v66 = vld [vmem:[%s1 + $0xe0] sm:$0xff]
  %v67 = vld [vmem:[%s1 + $0xe8] sm:$0xff]
  %v68 = vld [vmem:[%s1 + $0xf0] sm:$0xff]
  %v69 = vld [vmem:[%s1 + $0xf8] sm:$0xff]
  %v70 = vld [vmem:[%s1 + $0x100] sm:$0xff]
  %v71 = vld [vmem:[%s1 + $0x108] sm:$0xff]
  %v72 = vld [vmem:[%s1 + $0x110] sm:$0xff]
  %v73 = vld [vmem:[%s1 + $0x118] sm:$0xff]
  %v74 = vld [vmem:[%s1 + $0x120] sm:$0xff]
  %v75 = vld [vmem:[%s1 + $0x128] sm:$0xff]
  %v76 = vld [vmem:[%s1 + $0x130] sm:$0xff]
  %v77 = vld [vmem:[%s1 + $0x138] sm:$0xff]
  %v78 = vld [vmem:[%s1 + $0x140] sm:$0xff]
  %v79 = vld [vmem:[%s1 + $0x148] sm:$0xff]
  %v80 = vld [vmem:[%s1 + $0x150] sm:$0xff]
  %v81 = vld [vmem:[%s1 + $0x158] sm:$0xff]
  %v82 = vld [vmem:[%s1 + $0x160] sm:$0xff]
  %v83 = vld [vmem:[%s1 + $0x168] sm:$0xff]
  %v84 = vld [vmem:[%s1 + $0x170] sm:$0xff]
  %v85 = vld [vmem:[%s1 + $0x178] sm:$0xff]
  %v86 = vld [vmem:[%s1 + $0x180] sm:$0xff]
  %v87 = vld [vmem:[%s1 + $0x188] sm:$0xff]
  %v88 = vld [vmem:[%s1 + $0x190] sm:$0xff]
  %v89 = vld [vmem:[%s1 + $0x198] sm:$0xff]
  %v90 = vld [vmem:[%s1 + $0x1a0] sm:$0xff]
  %v91 = vld [vmem:[%s1 + $0x1a8] sm:$0xff]
  %v92 = vld [vmem:[%s1 + $0x1b0] sm:$0xff]
  %v93 = vld [vmem:[%s1 + $0x1b8] sm:$0xff]
  %v94 = vld [vmem:[%s1 + $0x1c0] sm:$0xff]
  %v95 = vld [vmem:[%s1 + $0x1c8] sm:$0xff]
  %v96 = vld [vmem:[%s1 + $0x1d0] sm:$0xff]
  %v97 = vld [vmem:[%s1 + $0x1d8] sm:$0xff]
  %v98 = vld [vmem:[%s1 + $0x1e0] sm:$0xff]
  %v99 = vld [vmem:[%s1 + $0x1e8] sm:$0xff]
  %v100 = vld [vmem:[%s1 + $0x1f0] sm:$0xff]
  %v101 = vld [vmem:[%s1 + $0x1f8] sm:$0xff]
  %v102 = vld [vmem:[%s1 + $0x200] sm:$0xff]
  %v103 = vld [vmem:[%s1 + $0x208] sm:$0xff]
  %v104 = vld [vmem:[%s1 + $0x210] sm:$0xff]
  %v105 = vld [vmem:[%s1 + $0x218] sm:$0xff]
  %v106 = vld [vmem:[%s1 + $0x220] sm:$0xff]
  %v107 = vld [vmem:[%s1 + $0x228] sm:$0xff]
  %v108 = vld [vmem:[%s1 + $0x230] sm:$0xff]
  %v109 = vld [vmem:[%s1 + $0x238] sm:$0xff]
  %v110 = vld [vmem:[%s1 + $0x240] sm:$0xff]
  %v111 = vld [vmem:[%s1 + $0x248] sm:$0xff]
  %v112 = vld [vmem:[%s1 + $0x250] sm:$0xff]
  %v113 = vld [vmem:[%s1 + $0x258] sm:$0xff]
  %v114 = vld [vmem:[%s1 + $0x260] sm:$0xff]
  %v115 = vld [vmem:[%s1 + $0x268] sm:$0xff]
  %v116 = vld [vmem:[%s1 + $0x270] sm:$0xff]
  %v117 = vld [vmem:[%s1 + $0x278] sm:$0xff]
  %v118 = vld [vmem:[%s1 + $0x280] sm:$0xff]
  %v119 = vld [vmem:[%s1 + $0x288] sm:$0xff]
  %v120 = vld [vmem:[%s1 + $0x290] sm:$0xff]
  %v121 = vld [vmem:[%s1 + $0x298] sm:$0xff]
  %v122 = vld [vmem:[%s1 + $0x2a0] sm:$0xff]
  %v123 = vld [vmem:[%s1 + $0x2a8] sm:$0xff]
  %v124 = vld [vmem:[%s1 + $0x2b0] sm:$0xff]
  %v125 = vld [vmem:[%s1 + $0x2b8] sm:$0xff]
  %v126 = vld [vmem:[%s1 + $0x2c0] sm:$0xff]
  %v127 = vld [vmem:[%s1 + $0x2c8] sm:$0xff]
  %v128 = vld [vmem:[%s1 + $0x2d0] sm:$0xff]
  %v129 = vld [vmem:[%s1 + $0x2d8] sm:$0xff]
  %v130 = vld [vmem:[%s1 + $0x2e0] sm:$0xff]
  %v131 = vld [vmem:[%s1 + $0x2e8] sm:$0xff]
  %v132 = vld [vmem:[%s1 + $0x2f0] sm:$0xff]
  %v133 = vld [vmem:[%s1 + $0x2f8] sm:$0xff]
  %v134 = vld [vmem:[%s1 + $0x300] sm:$0xff]
  %v135 = vld [vmem:[%s1 + $0x308] sm:$0xff]
  %v136 = vld [vmem:[%s1 + $0x310] sm:$0xff]
  %v137 = vld [vmem:[%s1 + $0x318] sm:$0xff]
  %v138 = vld [vmem:[%s1 + $0x320] sm:$0xff]
  %v139 = vld [vmem:[%s1 + $0x328] sm:$0xff]
  %v140 = vld [vmem:[%s1 + $0x330] sm:$0xff]
  %v141 = vld [vmem:[%s1 + $0x338] sm:$0xff]
  %v142 = vld [vmem:[%s1 + $0x340] sm:$0xff]
  %v143 = vld [vmem:[%s1 + $0x348] sm:$0xff]
  %v144 = vld [vmem:[%s1 + $0x350] sm:$0xff]
  %v145 = vld [vmem:[%s1 + $0x358] sm:$0xff]
  %v146 = vld [vmem:[%s1 + $0x360] sm:$0xff]
  %v147 = vld [vmem:[%s1 + $0x368] sm:$0xff]
  %v148 = vld [vmem:[%s1 + $0x370] sm:$0xff]
  %v149 = vld [vmem:[%s1 + $0x378] sm:$0xff]
  %v150 = vld [vmem:[%s1 + $0x380] sm:$0xff]
  %v151 = vld [vmem:[%s1 + $0x388] sm:$0xff]
  %v152 = vld [vmem:[%s1 + $0x390] sm:$0xff]
  %v153 = vld [vmem:[%s1 + $0x398] sm:$0xff]
  %v154 = vld [vmem:[%s1 + $0x3a0] sm:$0xff]
  %v155 = vld [vmem:[%s1 + $0x3a8] sm:$0xff]
  %v156 = vld [vmem:[%s1 + $0x3b0] sm:$0xff]
  %v157 = vld [vmem:[%s1 + $0x3b8] sm:$0xff]
  %v158 = vld [vmem:[%s1 + $0x3c0] sm:$0xff]
  %v159 = vld [vmem:[%s1 + $0x3c8] sm:$0xff]
  %v160 = vld [vmem:[%s1 + $0x3d0] sm:$0xff]
  %v161 = vld [vmem:[%s1 + $0x3d8] sm:$0xff]
  %v162 = vld [vmem:[%s1 + $0x3e0] sm:$0xff]
  %v163 = vld [vmem:[%s1 + $0x3e8] sm:$0xff]
  %v164 = vld [vmem:[%s1 + $0x3f0] sm:$0xff]
  %v165 = vld [vmem:[%s1 + $0x3f8] sm:$0xff]
  %v166 = vld [vmem:[%s2] sm:$0x1]
  %v168 = vperm.slane %v166, 0
  %170 = vmatpush.msra.mxu0 %v53
  %171 = vmatpush.msra.mxu0 %v52
  %172 = vmatpush.msra.mxu0 %v51
  %173 = vmatpush.msra.mxu0 %v50
  %174 = vmatpush.msra.mxu0 %v49
  %175 = vmatpush.msra.mxu0 %v48
  %176 = vmatpush.msra.mxu0 %v47
  %177 = vmatpush.msra.mxu0 %v46
  %178 = vmatpush.msra.mxu0 %v45
  %179 = vmatpush.msra.mxu0 %v44
  %180 = vmatpush.msra.mxu0 %v43
  %181 = vmatpush.msra.mxu0 %v42
  %182 = vmatpush.msra.mxu0 %v41
  %183 = vmatpush.msra.mxu0 %v40
  %184 = vmatpush.msra.mxu0 %v39
  %185 = vmatpush.msra.mxu0 %v38
  %186 = vmatmul.f32.gmra.mxu0 %v14
  %v187 = vpop.f32.mrf.mxu0
  %v188 = vadd.f32 %v168, %v187
  %189 = vmatmul.f32.gmra.mxu0 %v22
  %v190 = vpop.f32.mrf.mxu0
  %v191 = vadd.f32 %v168, %v190
  %192 = vmatmul.f32.gmra.mxu0 %v30
  %v193 = vpop.f32.mrf.mxu0
  %v194 = vadd.f32 %v168, %v193
  %195 = vdwg.mxu0
  %196 = vmatpush.msra.mxu0 %v69
  %197 = vmatpush.msra.mxu0 %v68
  %198 = vmatpush.msra.mxu0 %v67
  %199 = vmatpush.msra.mxu0 %v66
  %200 = vmatpush.msra.mxu0 %v65
  %201 = vmatpush.msra.mxu0 %v64
  %202 = vmatpush.msra.mxu0 %v63
  %203 = vmatpush.msra.mxu0 %v62
  %204 = vmatpush.msra.mxu0 %v61
  %205 = vmatpush.msra.mxu0 %v60
  %206 = vmatpush.msra.mxu0 %v59
  %207 = vmatpush.msra.mxu0 %v58
  %208 = vmatpush.msra.mxu0 %v57
  %209 = vmatpush.msra.mxu0 %v56
  %210 = vmatpush.msra.mxu0 %v55
  %211 = vmatpush.msra.mxu0 %v54
  %212 = vmatmul.f32.gmra.mxu0 %v15
  %v213 = vpop.f32.mrf.mxu0
  %v214 = vadd.f32 %v188, %v213
  %215 = vmatmul.f32.gmra.mxu0 %v23
  %v216 = vpop.f32.mrf.mxu0
  %v217 = vadd.f32 %v191, %v216
  %218 = vmatmul.f32.gmra.mxu0 %v31
  %v219 = vpop.f32.mrf.mxu0
  %v220 = vadd.f32 %v194, %v219
  %221 = vdwg.mxu0
  %222 = vmatpush.msra.mxu0 %v85
  %223 = vmatpush.msra.mxu0 %v84
  %224 = vmatpush.msra.mxu0 %v83
  %225 = vmatpush.msra.mxu0 %v82
  %226 = vmatpush.msra.mxu0 %v81
  %227 = vmatpush.msra.mxu0 %v80
  %228 = vmatpush.msra.mxu0 %v79
  %229 = vmatpush.msra.mxu0 %v78
  %230 = vmatpush.msra.mxu0 %v77
  %231 = vmatpush.msra.mxu0 %v76
  %232 = vmatpush.msra.mxu0 %v75
  %233 = vmatpush.msra.mxu0 %v74
  %234 = vmatpush.msra.mxu0 %v73
  %235 = vmatpush.msra.mxu0 %v72
  %236 = vmatpush.msra.mxu0 %v71
  %237 = vmatpush.msra.mxu0 %v70
  %238 = vmatmul.f32.gmra.mxu0 %v16
  %v239 = vpop.f32.mrf.mxu0
  %v240 = vadd.f32 %v214, %v239
  %241 = vmatmul.f32.gmra.mxu0 %v24
  %v242 = vpop.f32.mrf.mxu0
  %v243 = vadd.f32 %v217, %v242
  %244 = vmatmul.f32.gmra.mxu0 %v32
  %v245 = vpop.f32.mrf.mxu0
  %v246 = vadd.f32 %v220, %v245
  %247 = vdwg.mxu0
  %248 = vmatpush.msra.mxu0 %v101
  %249 = vmatpush.msra.mxu0 %v100
  %250 = vmatpush.msra.mxu0 %v99
  %251 = vmatpush.msra.mxu0 %v98
  %252 = vmatpush.msra.mxu0 %v97
  %253 = vmatpush.msra.mxu0 %v96
  %254 = vmatpush.msra.mxu0 %v95
  %255 = vmatpush.msra.mxu0 %v94
  %256 = vmatpush.msra.mxu0 %v93
  %257 = vmatpush.msra.mxu0 %v92
  %258 = vmatpush.msra.mxu0 %v91
  %259 = vmatpush.msra.mxu0 %v90
  %260 = vmatpush.msra.mxu0 %v89
  %261 = vmatpush.msra.mxu0 %v88
  %262 = vmatpush.msra.mxu0 %v87
  %263 = vmatpush.msra.mxu0 %v86
  %264 = vmatmul.f32.gmra.mxu0 %v17
  %v265 = vpop.f32.mrf.mxu0
  %v266 = vadd.f32 %v240, %v265
  %267 = vmatmul.f32.gmra.mxu0 %v25
  %v268 = vpop.f32.mrf.mxu0
  %v269 = vadd.f32 %v243, %v268
  %270 = vmatmul.f32.gmra.mxu0 %v33
  %v271 = vpop.f32.mrf.mxu0
  %v272 = vadd.f32 %v246, %v271
  %273 = vdwg.mxu0
  %274 = vmatpush.msra.mxu0 %v117
  %275 = vmatpush.msra.mxu0 %v116
  %276 = vmatpush.msra.mxu0 %v115
  %277 = vmatpush.msra.mxu0 %v114
  %278 = vmatpush.msra.mxu0 %v113
  %279 = vmatpush.msra.mxu0 %v112
  %280 = vmatpush.msra.mxu0 %v111
  %281 = vmatpush.msra.mxu0 %v110
  %282 = vmatpush.msra.mxu0 %v109
  %283 = vmatpush.msra.mxu0 %v108
  %284 = vmatpush.msra.mxu0 %v107
  %285 = vmatpush.msra.mxu0 %v106
  %286 = vmatpush.msra.mxu0 %v105
  %287 = vmatpush.msra.mxu0 %v104
  %288 = vmatpush.msra.mxu0 %v103
  %289 = vmatpush.msra.mxu0 %v102
  %290 = vmatmul.f32.gmra.mxu0 %v18
  %v291 = vpop.f32.mrf.mxu0
  %v292 = vadd.f32 %v266, %v291
  %293 = vmatmul.f32.gmra.mxu0 %v26
  %v294 = vpop.f32.mrf.mxu0
  %v295 = vadd.f32 %v269, %v294
  %296 = vmatmul.f32.gmra.mxu0 %v34
  %v297 = vpop.f32.mrf.mxu0
  %v298 = vadd.f32 %v272, %v297
  %299 = vdwg.mxu0
  %300 = vmatpush.msra.mxu0 %v133
  %301 = vmatpush.msra.mxu0 %v132
  %302 = vmatpush.msra.mxu0 %v131
  %303 = vmatpush.msra.mxu0 %v130
  %304 = vmatpush.msra.mxu0 %v129
  %305 = vmatpush.msra.mxu0 %v128
  %306 = vmatpush.msra.mxu0 %v127
  %307 = vmatpush.msra.mxu0 %v126
  %308 = vmatpush.msra.mxu0 %v125
  %309 = vmatpush.msra.mxu0 %v124
  %310 = vmatpush.msra.mxu0 %v123
  %311 = vmatpush.msra.mxu0 %v122
  %312 = vmatpush.msra.mxu0 %v121
  %313 = vmatpush.msra.mxu0 %v120
  %314 = vmatpush.msra.mxu0 %v119
  %315 = vmatpush.msra.mxu0 %v118
  %316 = vmatmul.f32.gmra.mxu0 %v19
  %v317 = vpop.f32.mrf.mxu0
  %v318 = vadd.f32 %v292, %v317
  %319 = vmatmul.f32.gmra.mxu0 %v27
  %v320 = vpop.f32.mrf.mxu0
  %v321 = vadd.f32 %v295, %v320
  %322 = vmatmul.f32.gmra.mxu0 %v35
  %v323 = vpop.f32.mrf.mxu0
  %v324 = vadd.f32 %v298, %v323
  %325 = vdwg.mxu0
  %326 = vmatpush.msra.mxu0 %v149
  %327 = vmatpush.msra.mxu0 %v148
  %328 = vmatpush.msra.mxu0 %v147
  %329 = vmatpush.msra.mxu0 %v146
  %330 = vmatpush.msra.mxu0 %v145
  %331 = vmatpush.msra.mxu0 %v144
  %332 = vmatpush.msra.mxu0 %v143
  %333 = vmatpush.msra.mxu0 %v142
  %334 = vmatpush.msra.mxu0 %v141
  %335 = vmatpush.msra.mxu0 %v140
  %336 = vmatpush.msra.mxu0 %v139
  %337 = vmatpush.msra.mxu0 %v138
  %338 = vmatpush.msra.mxu0 %v137
  %339 = vmatpush.msra.mxu0 %v136
  %340 = vmatpush.msra.mxu0 %v135
  %341 = vmatpush.msra.mxu0 %v134
  %342 = vmatmul.f32.gmra.mxu0 %v20
  %v343 = vpop.f32.mrf.mxu0
  %v344 = vadd.f32 %v318, %v343
  %345 = vmatmul.f32.gmra.mxu0 %v28
  %v346 = vpop.f32.mrf.mxu0
  %v347 = vadd.f32 %v321, %v346
  %348 = vmatmul.f32.gmra.mxu0 %v36
  %v349 = vpop.f32.mrf.mxu0
  %v350 = vadd.f32 %v324, %v349
  %351 = vdwg.mxu0
  %352 = vmatpush.msra.mxu0 %v165
  %353 = vmatpush.msra.mxu0 %v164
  %354 = vmatpush.msra.mxu0 %v163
  %355 = vmatpush.msra.mxu0 %v162
  %356 = vmatpush.msra.mxu0 %v161
  %357 = vmatpush.msra.mxu0 %v160
  %358 = vmatpush.msra.mxu0 %v159
  %359 = vmatpush.msra.mxu0 %v158
  %360 = vmatpush.msra.mxu0 %v157
  %361 = vmatpush.msra.mxu0 %v156
  %362 = vmatpush.msra.mxu0 %v155
  %363 = vmatpush.msra.mxu0 %v154
  %364 = vmatpush.msra.mxu0 %v153
  %365 = vmatpush.msra.mxu0 %v152
  %366 = vmatpush.msra.mxu0 %v151
  %367 = vmatpush.msra.mxu0 %v150
  %368 = vmatmul.f32.gmra.mxu0 %v21
  %v369 = vpop.f32.mrf.mxu0
  %v370 = vadd.f32 %v344, %v369
  %371 = vmatmul.f32.gmra.mxu0 %v29
  %v372 = vpop.f32.mrf.mxu0
  %v373 = vadd.f32 %v347, %v372
  %374 = vmatmul.f32.gmra.mxu0 %v37
  %v375 = vpop.f32.mrf.mxu0
  %v376 = vadd.f32 %v350, %v375
  %377 = vdwg.mxu0
  %vm378 = vcmask 80896
  %379 = vst.msk [vmem:[%s3] sm:$0xff] %vm378, %v370
  %380 = vst.msk [vmem:[%s3 + $0x8] sm:$0xff] %vm378, %v373
  %381 = vst.msk [vmem:[%s3 + $0x10] sm:$0xff] %vm378, %v376
  // Predicated region
  $region14: #{tpu_custom_call.1} parent=0 // pred_check
    _
  $region15: #{tpu_custom_call.1} parent=0 // pred_check_branch
    %383 = sbr.rel (0) target = $region17
  $region16: #{tpu_custom_call.1} parent=0 // pred_region
    _
  $region17: #{tpu_custom_call.1} parent=0 // pred_fallthru
    _
  // Predicated region
  $region18: #{tpu_custom_call.1} parent=0 // pred_check
    _
  $region19: #{tpu_custom_call.1} parent=0 // pred_check_branch
    %385 = sbr.rel (0) target = $region21
  $region20: #{tpu_custom_call.1} parent=0 // pred_region
    _
  $region21: #{tpu_custom_call.1} parent=0 // pred_fallthru
    _

</llo_original>
